<compile_context>
chip_gen: v5e
topology: v5e:2x2
jax: 0.10.0
libtpu: 0.0.40
codegen_flags: <defaults>
</compile_context>

<pallas_src>
import jax
import jax.numpy as jnp
from jax.experimental import pallas as pl
from jax.experimental.pallas import tpu as pltpu


def _pick_hw_chunk(HW, max_chunk=4096):
    """Chunk size for the pooling pass: whole HW if small, else a lane-aligned divisor."""
    if HW <= max_chunk:
        return HW
    c = max_chunk - (max_chunk % 128)
    while c >= 128:
        if HW % c == 0:
            return c
        c -= 128
    return HW  # no 128-multiple divisor; fall back to a single pass


def _vmem_limit_bytes():
    """Generous scoped-VMEM limit derived from the chip (v5e/v6e 128 MiB, v7x 64 MiB)."""
    try:
        cap = pltpu.get_tpu_info().vmem_capacity_bytes
    except Exception:
        cap = 64 * 1024 * 1024  # conservative (v7x-sized) fallback
    return int(min(cap * 3 // 4, 96 * 1024 * 1024))


def _make_se_kernel(C, HW, ks, x_dtype, hw_chunk):
    p = (ks - 1) // 2
    inv_hw = 1.0 / float(HW)
    nchunks = HW // hw_chunk

    def se_kernel(x_ref, params_ref, o_ref):
        # x_ref / o_ref : (1, C, HW) block (channels on sublanes, spatial on lanes)
        # params_ref    : SMEM f32 (3*ks + 2,) = [w1_avg | w1_max | w2 | b1 | b2]

        # ---- fused avg + max spatial pooling (AdaptiveAvg/MaxPool2d(1)) ----
        # keepdims reductions give (1, C, 1) directly in the sublane layout the
        # gate broadcast needs later.  For large blocks the chunked loop avoids
        # materializing a full-size f32 copy of a low-precision block.
        if nchunks == 1:
            xf = x_ref[...].astype(jnp.float32)               # (1, C, HW)
            ssum = jnp.sum(xf, axis=-1, keepdims=True)        # (1, C, 1)
            smax = jnp.max(xf, axis=-1, keepdims=True)        # (1, C, 1)
        else:
            def body(i, carry):
                s, m = carry
                off = pl.multiple_of(i * hw_chunk, hw_chunk)
                blk = x_ref[:, :, pl.ds(off, hw_chunk)].astype(jnp.float32)
                return (s + jnp.sum(blk, axis=-1, keepdims=True),
                        jnp.maximum(m, jnp.max(blk, axis=-1, keepdims=True)))
            ssum, smax = jax.lax.fori_loop(
                0, nchunks, body,
                (jnp.zeros((1, C, 1), jnp.float32),
                 jnp.full((1, C, 1), -jnp.inf, jnp.float32)),
                unroll=nchunks <= 8)
        avg_col = (ssum * inv_hw).reshape(C, 1)               # (C, 1)
        max_col = smax.reshape(C, 1)                          # (C, 1)

        # ---- channel convs as banded-Toeplitz matvecs on the MXU ----
        # Band matrices built in-register from iota + SMEM taps: 'same' zero
        # padding at the channel edges falls out of the band simply not
        # existing outside [0, C).  (Matches nn.Conv1d cross-correlation.)
        # TODO(synk): for large C, build these once into VMEM scratch under
        # @pl.when(pl.program_id(0) == 0) instead of per grid step.
        row = jax.lax.broadcasted_iota(jnp.int32, (C, C), 0)  # output channel c
        col = jax.lax.broadcasted_iota(jnp.int32, (C, C), 1)  # input channel i
        d = col - row                                         # i - c
        a_mat = jnp.zeros((C, C), jnp.float32)
        m_mat = jnp.zeros((C, C), jnp.float32)
        c2_mat = jnp.zeros((C, C), jnp.float32)
        for t in range(ks):
            tap = d == (t - p)
            a_mat = jnp.where(tap, params_ref[t], a_mat)             # conv1, avg chan
            m_mat = jnp.where(tap, params_ref[ks + t], m_mat)        # conv1, max chan
            c2_mat = jnp.where(tap, params_ref[2 * ks + t], c2_mat)  # conv2

        y1 = (jnp.dot(a_mat, avg_col, preferred_element_type=jnp.float32)
              + jnp.dot(m_mat, max_col, preferred_element_type=jnp.float32)
              + params_ref[3 * ks])                                  # (C, 1) conv1 + b1
        # NOTE: the PyTorch forward never applies self.relu, so neither do we.
        y2 = (jnp.dot(c2_mat, y1, preferred_element_type=jnp.float32)
              + params_ref[3 * ks + 1])                              # (C, 1) conv2 + b2
        gate = jax.nn.sigmoid(y2).reshape(1, C, 1)                   # per-channel gate

        # ---- gating multiply: re-read the VMEM-resident block (no long-lived
        #      f32 slab copy), broadcast the gate across the HW lanes ----
        if x_dtype == jnp.float32:
            o_ref[...] = x_ref[...] * gate
        else:
            # Native-dtype multiply (bf16 VALU on v6e/v7x).
            # TODO(synk): on v5e (no bf16 VPU) keep this multiply in f32.
            o_ref[...] = (x_ref[...] * gate.astype(x_dtype)).astype(o_ref.dtype)

    return se_kernel


def se_block_pallas(x, w1, b1, w2, b2):
    """x: (B, C, H, W); w1: (1, 2, ks); b1: (1,); w2: (1, 1, ks); b2: (1,)."""
    B, C, H, W = x.shape
    HW = H * W
    ks = w1.shape[-1]

    # Lane-dense writeback: keep spatial (HW) on the lane axis.  (If HW is not a
    # multiple of 128 the stores become masked; fine for correctness.)
    x3 = x.reshape(B, C, HW)

    # All conv taps + biases ride in SMEM as scalars — no VMEM weight DMA.
    params = jnp.concatenate([
        w1[0, 0].astype(jnp.float32),   # conv1 taps, input channel 0 (avg path)
        w1[0, 1].astype(jnp.float32),   # conv1 taps, input channel 1 (max path)
        w2[0, 0].astype(jnp.float32),   # conv2 taps
        b1.astype(jnp.float32),
        b2.astype(jnp.float32),
    ])                                   # (3*ks + 2,)

    hw_chunk = _pick_hw_chunk(HW)
    # One batch per grid step: for realistic feature maps C*HW*itemsize is
    # already a multi-MB block, and it keeps the channel-mixing matvecs and the
    # (1, C, 1) gate in layouts Mosaic handles natively.
    # TODO(synk): if a single batch (C*H*W) ever exceeds the VMEM budget, tile
    # HW inside the step with running sum/max accumulators + a second gating pass.
    kernel = _make_se_kernel(C, HW, ks, x.dtype, hw_chunk)

    itemsize = x.dtype.itemsize
    cost = pl.CostEstimate(
        flops=int(4 * B * C * HW + 6 * B * C * C),
        transcendentals=int(B * C),
        bytes_accessed=int(2 * B * C * HW * itemsize + params.size * 4),
    )

    out = pl.pallas_call(
        kernel,
        out_shape=jax.ShapeDtypeStruct((B, C, HW), x.dtype),
        grid_spec=pltpu.PrefetchScalarGridSpec(
            num_scalar_prefetch=0,
            grid=(B,),
            in_specs=[
                pl.BlockSpec((1, C, HW), lambda b: (b, 0, 0)),
                pl.BlockSpec(memory_space=pltpu.MemorySpace.SMEM),
            ],
            out_specs=pl.BlockSpec((1, C, HW), lambda b: (b, 0, 0)),
        ),
        compiler_params=pltpu.CompilerParams(
            dimension_semantics=("parallel",),
            vmem_limit_bytes=_vmem_limit_bytes(),
        ),
        cost_estimate=cost,
    )(x3, params)
    return out.reshape(B, C, H, W)


def se_block_ref(x, w1, b1, w2, b2):
    """Pure-JAX reference matching the PyTorch forward exactly."""
    B, C, H, W = x.shape
    avg = jnp.mean(x, axis=(2, 3))                       # (B, C)
    mx = jnp.max(x, axis=(2, 3))                         # (B, C)
    y = jnp.stack([avg, mx], axis=1)                     # (B, 2, C)
    ks = w1.shape[-1]
    p = (ks - 1) // 2
    y1 = jax.lax.conv_general_dilated(
        y, w1, (1,), [(p, p)], dimension_numbers=("NCH", "OIH", "NCH")
    ) + b1[None, :, None]                                # (B, 1, C)
    y2 = jax.lax.conv_general_dilated(
        y1, w2, (1,), [(p, p)], dimension_numbers=("NCH", "OIH", "NCH")
    ) + b2[None, :, None]                                # (B, 1, C)
    s = jax.nn.sigmoid(y2).reshape(B, C, 1, 1)
    return x * s


if __name__ == "__main__":
    B, C, H, W = 2, 4, 16, 16
    in_channel = C
    ks = int(int(in_channel / 20) * 2 + 1)
    if ks < 3:
        ks = 3

    key = jax.random.PRNGKey(0)
    kx, k1, k2, k3, k4 = jax.random.split(key, 5)
    x = jax.random.normal(kx, (B, C, H, W), dtype=jnp.float32)
    # Deterministic synthetic parameters matching nn.Conv1d shapes.
    w1 = jax.random.normal(k1, (1, 2, ks), dtype=jnp.float32) * 0.3   # conv1.weight
    b1 = jax.random.normal(k2, (1,), dtype=jnp.float32) * 0.1         # conv1.bias
    w2 = jax.random.normal(k3, (1, 1, ks), dtype=jnp.float32) * 0.3   # conv2.weight
    b2 = jax.random.normal(k4, (1,), dtype=jnp.float32) * 0.1         # conv2.bias

    out = se_block_pallas(x, w1, b1, w2, b2)
    jax.block_until_ready(out)

    ref = se_block_ref(x, w1, b1, w2, b2)
    assert out.shape == (B, C, H, W)
    assert jnp.allclose(out, ref, atol=1e-5, rtol=1e-5), "mismatch vs reference"
    print("KERNEL_OK")
</pallas_src>

<mosaic_0001>
module attributes {stable_mosaic.version = 11 : i64} {
  func.func @se_kernel(%arg0: i32, %arg1: memref<1x4x256xf32, #tpu.memory_space<vmem>>, %arg2: memref<11xf32, #tpu.memory_space<smem>>, %arg3: memref<1x4x256xf32, #tpu.memory_space<vmem>>) attributes {dimension_semantics = [#tpu.dimension_semantics<parallel>], iteration_bounds = array<i64: 2>, scalar_prefetch = 0 : i64, scratch_operands = 0 : i64, tpu.core_type = #tpu.core_type<tc>, window_params = [{transform_indices = @transform_0, window_bounds = array<i64: 1, 4, 256>}, {transform_indices = @transform_1, window_bounds = array<i64: 11>}, {transform_indices = @transform_2, window_bounds = array<i64: 1, 4, 256>}]} {
    %c0 = arith.constant 0 : index
    %c0_0 = arith.constant 0 : index
    %c0_1 = arith.constant 0 : index
    %0 = vector.load %arg1[%c0, %c0_0, %c0_1] : memref<1x4x256xf32, #tpu.memory_space<vmem>>, vector<1x4x256xf32>
    %cst = arith.constant dense<0.000000e+00> : vector<1x4xf32>
    %1 = vector.multi_reduction <add>, %0, %cst [2] : vector<1x4x256xf32> to vector<1x4xf32>
    %2 = vector.shape_cast %1 : vector<1x4xf32> to vector<1x4x1xf32>
    %cst_2 = arith.constant dense<0xFF800000> : vector<1x4xf32>
    %3 = vector.multi_reduction <maximumf>, %0, %cst_2 [2] : vector<1x4x256xf32> to vector<1x4xf32>
    %4 = vector.shape_cast %3 : vector<1x4xf32> to vector<1x4x1xf32>
    %cst_3 = arith.constant 3.906250e-03 : f32
    %5 = vector.broadcast %cst_3 : f32 to vector<1x4x1xf32>
    %6 = arith.mulf %2, %5 : vector<1x4x1xf32>
    %7 = vector.shape_cast %6 : vector<1x4x1xf32> to vector<4x1xf32>
    %8 = vector.shape_cast %4 : vector<1x4x1xf32> to vector<4x1xf32>
    %9 = tpu.iota {dimensions = array<i32: 0>} : vector<4x4xi32>
    %10 = tpu.iota {dimensions = array<i32: 1>} : vector<4x4xi32>
    %11 = arith.subi %10, %9 : vector<4x4xi32>
    %cst_4 = arith.constant 0.000000e+00 : f32
    %12 = vector.broadcast %cst_4 : f32 to vector<4x4xf32>
    %cst_5 = arith.constant 0.000000e+00 : f32
    %13 = vector.broadcast %cst_5 : f32 to vector<4x4xf32>
    %cst_6 = arith.constant 0.000000e+00 : f32
    %14 = vector.broadcast %cst_6 : f32 to vector<4x4xf32>
    %c-1_i32 = arith.constant -1 : i32
    %15 = vector.broadcast %c-1_i32 : i32 to vector<4x4xi32>
    %16 = arith.cmpi eq, %11, %15 : vector<4x4xi32>
    %c0_7 = arith.constant 0 : index
    %17 = memref.load %arg2[%c0_7] : memref<11xf32, #tpu.memory_space<smem>>
    %18 = vector.broadcast %17 : f32 to vector<4x4xf32>
    %19 = arith.select %16, %18, %12 : vector<4x4xi1>, vector<4x4xf32>
    %c3 = arith.constant 3 : index
    %20 = memref.load %arg2[%c3] : memref<11xf32, #tpu.memory_space<smem>>
    %21 = vector.broadcast %20 : f32 to vector<4x4xf32>
    %22 = arith.select %16, %21, %13 : vector<4x4xi1>, vector<4x4xf32>
    %c6 = arith.constant 6 : index
    %23 = memref.load %arg2[%c6] : memref<11xf32, #tpu.memory_space<smem>>
    %24 = vector.broadcast %23 : f32 to vector<4x4xf32>
    %25 = arith.select %16, %24, %14 : vector<4x4xi1>, vector<4x4xf32>
    %c0_i32 = arith.constant 0 : i32
    %26 = vector.broadcast %c0_i32 : i32 to vector<4x4xi32>
    %27 = arith.cmpi eq, %11, %26 : vector<4x4xi32>
    %c1 = arith.constant 1 : index
    %28 = memref.load %arg2[%c1] : memref<11xf32, #tpu.memory_space<smem>>
    %29 = vector.broadcast %28 : f32 to vector<4x4xf32>
    %30 = arith.select %27, %29, %19 : vector<4x4xi1>, vector<4x4xf32>
    %c4 = arith.constant 4 : index
    %31 = memref.load %arg2[%c4] : memref<11xf32, #tpu.memory_space<smem>>
    %32 = vector.broadcast %31 : f32 to vector<4x4xf32>
    %33 = arith.select %27, %32, %22 : vector<4x4xi1>, vector<4x4xf32>
    %c7 = arith.constant 7 : index
    %34 = memref.load %arg2[%c7] : memref<11xf32, #tpu.memory_space<smem>>
    %35 = vector.broadcast %34 : f32 to vector<4x4xf32>
    %36 = arith.select %27, %35, %25 : vector<4x4xi1>, vector<4x4xf32>
    %c1_i32 = arith.constant 1 : i32
    %37 = vector.broadcast %c1_i32 : i32 to vector<4x4xi32>
    %38 = arith.cmpi eq, %11, %37 : vector<4x4xi32>
    %c2 = arith.constant 2 : index
    %39 = memref.load %arg2[%c2] : memref<11xf32, #tpu.memory_space<smem>>
    %40 = vector.broadcast %39 : f32 to vector<4x4xf32>
    %41 = arith.select %38, %40, %30 : vector<4x4xi1>, vector<4x4xf32>
    %c5 = arith.constant 5 : index
    %42 = memref.load %arg2[%c5] : memref<11xf32, #tpu.memory_space<smem>>
    %43 = vector.broadcast %42 : f32 to vector<4x4xf32>
    %44 = arith.select %38, %43, %33 : vector<4x4xi1>, vector<4x4xf32>
    %c8 = arith.constant 8 : index
    %45 = memref.load %arg2[%c8] : memref<11xf32, #tpu.memory_space<smem>>
    %46 = vector.broadcast %45 : f32 to vector<4x4xf32>
    %47 = arith.select %38, %46, %36 : vector<4x4xi1>, vector<4x4xf32>
    %cst_8 = arith.constant dense<0.000000e+00> : vector<4x1xf32>
    %48 = tpu.matmul %41, %7, %cst_8 {dimension_numbers = #tpu.dot_dimension_numbers<[1], [0], [0], [1], [0, 0, 1, 1], [], []>} : vector<4x4xf32>, vector<4x1xf32>, vector<4x1xf32> -> vector<4x1xf32>
    %cst_9 = arith.constant dense<0.000000e+00> : vector<4x1xf32>
    %49 = tpu.matmul %44, %8, %cst_9 {dimension_numbers = #tpu.dot_dimension_numbers<[1], [0], [0], [1], [0, 0, 1, 1], [], []>} : vector<4x4xf32>, vector<4x1xf32>, vector<4x1xf32> -> vector<4x1xf32>
    %50 = arith.addf %48, %49 : vector<4x1xf32>
    %c9 = arith.constant 9 : index
    %51 = memref.load %arg2[%c9] : memref<11xf32, #tpu.memory_space<smem>>
    %52 = vector.broadcast %51 : f32 to vector<4x1xf32>
    %53 = arith.addf %50, %52 : vector<4x1xf32>
    %cst_10 = arith.constant dense<0.000000e+00> : vector<4x1xf32>
    %54 = tpu.matmul %47, %53, %cst_10 {dimension_numbers = #tpu.dot_dimension_numbers<[1], [0], [0], [1], [0, 0, 1, 1], [], []>} : vector<4x4xf32>, vector<4x1xf32>, vector<4x1xf32> -> vector<4x1xf32>
    %c10 = arith.constant 10 : index
    %55 = memref.load %arg2[%c10] : memref<11xf32, #tpu.memory_space<smem>>
    %56 = vector.broadcast %55 : f32 to vector<4x1xf32>
    %57 = arith.addf %54, %56 : vector<4x1xf32>
    %58 = arith.negf %57 : vector<4x1xf32>
    %59 = math.exp %58 : vector<4x1xf32>
    %cst_11 = arith.constant 1.000000e+00 : f32
    %60 = vector.broadcast %cst_11 : f32 to vector<4x1xf32>
    %61 = arith.addf %60, %59 : vector<4x1xf32>
    %62 = arith.divf %60, %61 : vector<4x1xf32>
    %63 = vector.shape_cast %62 : vector<4x1xf32> to vector<1x4x1xf32>
    %c0_12 = arith.constant 0 : index
    %c0_13 = arith.constant 0 : index
    %c0_14 = arith.constant 0 : index
    %64 = vector.load %arg1[%c0_12, %c0_13, %c0_14] : memref<1x4x256xf32, #tpu.memory_space<vmem>>, vector<1x4x256xf32>
    %65 = vector.broadcast %63 : vector<1x4x1xf32> to vector<1x4x256xf32>
    %66 = arith.mulf %64, %65 : vector<1x4x256xf32>
    %c0_15 = arith.constant 0 : index
    %c0_16 = arith.constant 0 : index
    %c0_17 = arith.constant 0 : index
    %67 = vector.load %arg3[%c0_15, %c0_16, %c0_17] : memref<1x4x256xf32, #tpu.memory_space<vmem>>, vector<1x4x256xf32>
    tpu.vector_store %arg3[%c0_15, %c0_16, %c0_17], %66 {strides = array<i32>} : memref<1x4x256xf32, #tpu.memory_space<vmem>>, vector<1x4x256xf32>,
    return
  }
  func.func @transform_0(%arg0: i32) -> (i32, i32, i32) {
    %c0_i32 = arith.constant 0 : i32
    %c0_i32_0 = arith.constant 0 : i32
    %c0_i32_1 = arith.constant 0 : i32
    return %arg0, %c0_i32, %c0_i32_0 : i32, i32, i32
  }
  func.func @transform_1(%arg0: i32) -> i32 {
    %c0_i32 = arith.constant 0 : i32
    %c0_i32_0 = arith.constant 0 : i32
    return %c0_i32 : i32
  }
  func.func @transform_2(%arg0: i32) -> (i32, i32, i32) {
    %c0_i32 = arith.constant 0 : i32
    %c0_i32_0 = arith.constant 0 : i32
    %c0_i32_1 = arith.constant 0 : i32
    return %arg0, %c0_i32, %c0_i32_0 : i32, i32, i32
  }
}

</mosaic_0001>

<llo_original>
// kernel: tpu_custom_call.1
$region0: #{tpu_custom_call.1}
  #allocation0 [shape = 'u32[]', space=smem, size = 0x4, offset = 0x4, fixed_abs, tag = 'smem constant byte address 0x4 - core index']
  #allocation1 [shape = 'u32[72,128]{1,0:T(1,128)}', space=vmem, size = 0x9000, scoped, tag = 'internal scratch']
  %s0 = inlined_call_operand.hbm [shape: f32[2,4,256], index: 0, kind: input, shape index: {}]
  %s1 = inlined_call_operand.hbm [shape: f32[11], index: 1, kind: input, shape index: {}]
  %s2 = inlined_call_operand.hbm [shape: f32[2,4,256], index: 2, kind: output, shape index: {}]
  %s3 = sld [smem:[#allocation0]]
  $region49: #{tpu_custom_call.1} parent=0
    _
  %s5 = ssub.s32 1, %s3
  %s6 = scalar_select 0, %s5, %s3
  $region1: #{tpu_custom_call.1} parent=0
    #allocation2 [shape = 'u8[8192]{0}', space=vmem, size = 0x2000, scoped, tag = 'input window, operand 0']
    #allocation3 [shape = 's32[2]{0}', space=sflag, size = 0x8, scoped, tag = 'scoped memory for tpu_custom_call.1']
    #allocation4 [shape = 's32[2]{0}', space=sflag, size = 0x8, scoped, tag = 'scoped memory for tpu_custom_call.1']
    #allocation5 [shape = 's32[2]{0}', space=sflag, size = 0x8, scoped, tag = 'scoped memory for tpu_custom_call.1']
    #allocation6 [shape = 'u8[512]{0}', space=smem, size = 0x200, scoped, tag = 'input window, operand 1, single buffered']
    #allocation7 [shape = 'u8[8192]{0}', space=vmem, size = 0x2000, scoped, tag = 'output window, operand 0']
    %7 = vsyncpa [#allocation3], 0
    %s8 = scalar_lea.sflag [#allocation3], 1
    %9 = vsyncpa %s8, 0
    %10 = vsyncpa [#allocation5], 0
    %11 = vsyncpa [#allocation4], 0
    %s12 = scalar_lea.sflag [#allocation4], 1
    %13 = vsyncpa %s12, 0
    loop: start=0, step=1, limit=4
    $region2: #{tpu_custom_call.1} parent=1 // loop_pre_header
      _
    $region3: #{tpu_custom_call.1} parent=1 // loop_header
      %s15 = sphi 0, %s19
      %p16 = scmp.ge.s32.totalorder %s15, 4
      %s25 = sphi 0, %s27
      %s28 = sphi 0, %s25
      %s29 = sphi 0, %s28
      %s45 = sphi 0, %s29
      %s49 = sphi 0, %s49
      %s51 = sphi 0, %s49
      %s52 = sphi 0, %s51
      %s66 = sphi 0, %s52
      %s72 = sphi 0, %s74
      %s75 = sphi 0, %s72
      %s76 = sphi 0, %s75
      %s92 = sphi 0, %s76
    $region4: #{tpu_custom_call.1} parent=1 // loop_header_branch
      %18 = sbr.rel (%p16) target = $region8
    $region5: #{tpu_custom_call.1} parent=1 // loop_body
      %s20 = ssub.s32 %s15, 1
      %s21 = ssub.s32 %s15, 2
      %s22 = sadd.s32 %s15, 1
      %s23 = ssub.s32 %s15, %s22
      %p24 = scmp.eq.s32.totalorder %s23, 0
      %s26 = sadd.s32 %s25, 1
      %s27 = scalar_select %p24, %s25, %s26
      %p30 = pneg %p24
      %p31 = scmp.eq.s32.totalorder %s15, 1
      %p32 = por %p30, %p31
      %p33 = scmp.ne.s32.totalorder %s25, %s28
      %p34 = scmp.eq.s32.totalorder %s15, 0
      %p35 = por %p33, %p34
      %p36 = scmp.ne.s32.totalorder %s25, %s28
      %p37 = scmp.eq.s32.totalorder %s20, 1
      %p38 = por %p36, %p37
      %p39 = scmp.ne.s32.totalorder %s28, %s29
      %p40 = scmp.eq.s32.totalorder %s20, 0
      %p41 = por %p39, %p40
      %p42 = scmp.ne.s32.totalorder %s28, %s29
      %p43 = scmp.eq.s32.totalorder %s21, 1
      %p44 = por %p42, %p43
      %p46 = scmp.ne.s32.totalorder %s29, %s45
      %p47 = scmp.eq.s32.totalorder %s21, 0
      %p48 = por %p46, %p47
      %s50 = sadd.s32 %s49, 1
      %p53 = scmp.eq.s32.totalorder %s15, 1
      %p54 = scmp.ne.s32.totalorder %s49, %s51
      %p55 = scmp.eq.s32.totalorder %s15, 0
      %p56 = por %p54, %p55
      %p57 = scmp.ne.s32.totalorder %s49, %s51
      %p58 = scmp.eq.s32.totalorder %s20, 1
      %p59 = por %p57, %p58
      %p60 = scmp.ne.s32.totalorder %s51, %s52
      %p61 = scmp.eq.s32.totalorder %s20, 0
      %p62 = por %p60, %p61
      %p63 = scmp.ne.s32.totalorder %s51, %s52
      %p64 = scmp.eq.s32.totalorder %s21, 1
      %p65 = por %p63, %p64
      %p67 = scmp.ne.s32.totalorder %s52, %s66
      %p68 = scmp.eq.s32.totalorder %s21, 0
      %p69 = por %p67, %p68
      %s70 = ssub.s32 %s15, %s22
      %p71 = scmp.eq.s32.totalorder %s70, 0
      %s73 = sadd.s32 %s72, 1
      %s74 = scalar_select %p71, %s72, %s73
      %p77 = pneg %p71
      %p78 = scmp.eq.s32.totalorder %s15, 1
      %p79 = por %p77, %p78
      %p80 = scmp.ne.s32.totalorder %s72, %s75
      %p81 = scmp.eq.s32.totalorder %s15, 0
      %p82 = por %p80, %p81
      %p83 = scmp.ne.s32.totalorder %s72, %s75
      %p84 = scmp.eq.s32.totalorder %s20, 1
      %p85 = por %p83, %p84
      %p86 = scmp.ne.s32.totalorder %s75, %s76
      %p87 = scmp.eq.s32.totalorder %s20, 0
      %p88 = por %p86, %p87
      %p89 = scmp.ne.s32.totalorder %s75, %s76
      %p90 = scmp.eq.s32.totalorder %s21, 1
      %p91 = por %p89, %p90
      %p93 = scmp.ne.s32.totalorder %s76, %s92
      %p94 = scmp.eq.s32.totalorder %s21, 0
      %p95 = por %p93, %p94
      %p96 = scmp.le.s32.totalorder 1, %s15
      %p97 = scmp.lt.s32.totalorder %s15, 3
      %p98 = pnand %p96, %p97
      %p99 = pneg %p98
      // Predicated region
      $region9: #{tpu_custom_call.1} parent=5 // pred_check
        _
      $region10: #{tpu_custom_call.1} parent=5 // pred_check_branch
        %101 = sbr.rel (%p98) target = $region12
      $region11: #{tpu_custom_call.1} parent=5 // pred_region
        %s102 = ssub.s32 %s15, 1
        // Predicated region
        $region13: #{tpu_custom_call.1} parent=11 // pred_check
          %p103 = pneg %p62
        $region14: #{tpu_custom_call.1} parent=11 // pred_check_branch
          %105 = sbr.rel (%p103) target = $region16
        $region15: #{tpu_custom_call.1} parent=11 // pred_region
          %107 = vsyncadd [#allocation5], 0
          %s109 = sshll.u32 %s1, 4
          %s110 = int_to_ptr.hbm [resolvable:$true] %s109
          %112 = dma.hbm_to_smem %s110, 16, [#allocation6], [#allocation5]
        $region16: #{tpu_custom_call.1} parent=11 // pred_fallthru
          _
      $region12: #{tpu_custom_call.1} parent=5 // pred_fallthru
        _
      %p113 = scmp.lt.s32.totalorder %s15, 2
      // Predicated region
      $region17: #{tpu_custom_call.1} parent=5 // pred_check
        %p114 = pneg %p113
      $region18: #{tpu_custom_call.1} parent=5 // pred_check_branch
        %116 = sbr.rel (%p114) target = $region20
      $region19: #{tpu_custom_call.1} parent=5 // pred_region
        // Predicated region
        $region21: #{tpu_custom_call.1} parent=19 // pred_check
          %p117 = pneg %p35
        $region22: #{tpu_custom_call.1} parent=19 // pred_check_branch
          %119 = sbr.rel (%p117) target = $region24
        $region23: #{tpu_custom_call.1} parent=19 // pred_region
          %s120 = sand.u32 %s25, 1
          %s121 = scalar_lea.sflag [#allocation3], %s120
          %s122 = sand.u32 %s25, 1
          %s123 = smul.addr %s122, 8
          %s124 = scalar_lea.vmem [#allocation2], %s123
          %126 = vsyncadd %s121, 0
          %s127 = smul.addr %s15, 2
          %s128 = smul.addr %s127, 4
          %s129 = scalar_lea.hbm %s0, %s128
          %s131 = sshll.u32 %s129, 4
          %s132 = int_to_ptr.hbm [resolvable:$true] %s131
          %s133 = sshll.u32 %s124, 4
          %s134 = int_to_ptr.vmem [resolvable:$true] %s133
          %136 = dma.hbm_to_vmem [thread:$0]  %s132, 128, %s134, %s121
        $region24: #{tpu_custom_call.1} parent=19 // pred_fallthru
          _
      $region20: #{tpu_custom_call.1} parent=5 // pred_fallthru
        _
      %p137 = scmp.le.s32.totalorder 1, %s15
      %p138 = scmp.lt.s32.totalorder %s15, 3
      %p139 = pnand %p137, %p138
      %p140 = pneg %p139
      // Predicated region
      $region25: #{tpu_custom_call.1} parent=5 // pred_check
        _
      $region26: #{tpu_custom_call.1} parent=5 // pred_check_branch
        %142 = sbr.rel (%p139) target = $region28
      $region27: #{tpu_custom_call.1} parent=5 // pred_region
        %s143 = ssub.s32 %s15, 1
        %s144 = sand.u32 %s28, 1
        %s145 = scalar_lea.sflag [#allocation3], %s144
        %s146 = sand.u32 %s28, 1
        %s147 = smul.addr %s146, 8
        %s148 = scalar_lea.vmem [#allocation2], %s147
        // Predicated region
        $region29: #{tpu_custom_call.1} parent=27 // pred_check
          %p149 = pneg %p41
        $region30: #{tpu_custom_call.1} parent=27 // pred_check_branch
          %151 = sbr.rel (%p149) target = $region32
        $region31: #{tpu_custom_call.1} parent=27 // pred_region
          %153 = dma.done %s145, 128
        $region32: #{tpu_custom_call.1} parent=27 // pred_fallthru
          _
        // Predicated region
        $region33: #{tpu_custom_call.1} parent=27 // pred_check
          %p154 = pneg %p62
        $region34: #{tpu_custom_call.1} parent=27 // pred_check_branch
          %156 = sbr.rel (%p154) target = $region36
        $region35: #{tpu_custom_call.1} parent=27 // pred_region
          %158 = dma.done [#allocation5], 16
        $region36: #{tpu_custom_call.1} parent=27 // pred_fallthru
          _
        %159 = sfence
        %s160 = sand.u32 %s28, 1
        %s161 = scalar_lea.sflag [#allocation3], %s160
        %s162 = sand.u32 %s28, 1
        %s163 = smul.addr %s162, 8
        %s164 = scalar_lea.vmem [#allocation2], %s163
        %p165 = pneg %p41
        %p166 = pneg %p38
        %p167 = pneg %p62
        %p168 = pneg %p59
        %p169 = pneg %p88
        %p170 = pneg %p85
        %s171 = sand.u32 %s75, 1
        %s172 = scalar_lea.sflag [#allocation4], %s171
        %s173 = sand.u32 %s75, 1
        %s174 = smul.addr %s173, 8
        %s175 = scalar_lea.vmem [#allocation7], %s174
        %v176 = vld [vmem:[%s148] sm:$0xff]
        %178 = vst [vmem:[#allocation1] ss:$2 sm:$0xff] %v176
        %v179 = vld.sshfl [vmem:[#allocation1] sm:$0xff pattern:$0x75316420]
        %v180 = vld.sshfl [vmem:[#allocation1 + $0x8] sm:$0xff pattern:$0x75316420]
        %vm183 = vcmask 1043456
        %v184 = vsel %vm183, %v179, 0.0
        %v185 = vsel %vm183, %v180, 0.0
        %v186 = vadd.f32 %v184, %v185
        %187 = vadd.xlane.f32.xlu0 %v186
        %v188 = vpop.xlane.xlu0 %187
        %189 = vst [vmem:[#allocation1] ss:$2 sm:$0xff] %v176
        %v190 = vld.sshfl [vmem:[#allocation1] sm:$0xff pattern:$0x75316420]
        %v191 = vld.sshfl [vmem:[#allocation1 + $0x8] sm:$0xff pattern:$0x75316420]
        %v194 = vsel %vm183, %v190, -inf
        %v195 = vsel %vm183, %v191, -inf
        %v196 = vmax.f32 %v194, %v195
        %197 = vmax.xlane.f32.xlu0 %v196
        %v198 = vpop.xlane.xlu0 %197
        %v199 = vmul.f32 %v188, 0.00390625
        %v200 = vlaneseq
        %v201 = vshrl.u32 %v200, 7
        %v202 = vlaneseq
        %v203 = vand.u32 %v202, 127
        %v204 = vsub.s32 %v203, %v201
        %vm205 = vcmp.eq.s32.totalorder %v204, 4294967295
        %s206 = sld [smem:[#allocation6]]
        %v207 = vstv %s206
        %v208 = vsel %vm205, %v207, 0.0
        %s209 = sld [smem:[#allocation6 + $0x3]]
        %v210 = vstv %s209
        %v211 = vsel %vm205, %v210, 0.0
        %s212 = sld [smem:[#allocation6 + $0x6]]
        %v213 = vstv %s212
        %v214 = vsel %vm205, %v213, 0.0
        %vm215 = vcmp.eq.s32.totalorder %v204, 0
        %s216 = sld [smem:[#allocation6 + $0x1]]
        %v217 = vstv %s216
        %v218 = vsel %vm215, %v217, %v208
        %s219 = sld [smem:[#allocation6 + $0x4]]
        %v220 = vstv %s219
        %v221 = vsel %vm215, %v220, %v211
        %s222 = sld [smem:[#allocation6 + $0x7]]
        %v223 = vstv %s222
        %v224 = vsel %vm215, %v223, %v214
        %vm225 = vcmp.eq.s32.totalorder %v204, 1
        %s226 = sld [smem:[#allocation6 + $0x2]]
        %v227 = vstv %s226
        %v228 = vsel %vm225, %v227, %v218
        %s229 = sld [smem:[#allocation6 + $0x5]]
        %v230 = vstv %s229
        %v231 = vsel %vm225, %v230, %v221
        %s232 = sld [smem:[#allocation6 + $0x8]]
        %v233 = vstv %s232
        %v234 = vsel %vm225, %v233, %v224
        %vm235 = vcmask 31744
        %v237 = vsel %vm235, %v231, 0
        %v240 = vsel %vm183, %v198, 0
        %242 = vmatpush.msra.mxu0 0.0
        %243 = vmatpush.msra.mxu0 0.0
        %244 = vmatpush.msra.mxu0 0.0
        %245 = vmatpush.msra.mxu0 0.0
        %246 = vmatpush.msra.mxu0 0.0
        %247 = vmatpush.msra.mxu0 0.0
        %248 = vmatpush.msra.mxu0 0.0
        %249 = vmatpush.msra.mxu0 0.0
        %250 = vmatpush.msra.mxu0 0.0
        %251 = vmatpush.msra.mxu0 0.0
        %252 = vmatpush.msra.mxu0 0.0
        %253 = vmatpush.msra.mxu0 0.0
        %254 = vmatpush.msra.mxu0 0.0
        %255 = vmatpush.msra.mxu0 0.0
        %256 = vmatpush.msra.mxu0 0.0
        %257 = vmatpush.msra.mxu0 %v240
        %258 = vmatmul.f32.gmra.mxu0 %v237
        %v259 = vpop.f32.mrf.mxu0
        %v260 = vadd.f32 0.0, %v259
        %261 = vdwg.mxu0
        %v263 = vsel %vm235, %v228, 0
        %v266 = vsel %vm183, %v199, 0
        %268 = vmatpush.msra.mxu0 0.0
        %269 = vmatpush.msra.mxu0 0.0
        %270 = vmatpush.msra.mxu0 0.0
        %271 = vmatpush.msra.mxu0 0.0
        %272 = vmatpush.msra.mxu0 0.0
        %273 = vmatpush.msra.mxu0 0.0
        %274 = vmatpush.msra.mxu0 0.0
        %275 = vmatpush.msra.mxu0 0.0
        %276 = vmatpush.msra.mxu0 0.0
        %277 = vmatpush.msra.mxu0 0.0
        %278 = vmatpush.msra.mxu0 0.0
        %279 = vmatpush.msra.mxu0 0.0
        %280 = vmatpush.msra.mxu0 0.0
        %281 = vmatpush.msra.mxu0 0.0
        %282 = vmatpush.msra.mxu0 0.0
        %283 = vmatpush.msra.mxu0 %v266
        %284 = vmatmul.f32.gmra.mxu0 %v263
        %v285 = vpop.f32.mrf.mxu0
        %v286 = vadd.f32 %v260, %v285
        %287 = vdwg.mxu0
        %s288 = sld [smem:[#allocation6 + $0x9]]
        %v289 = vstv %s288
        %v290 = vadd.f32 %v286, %v289
        %s291 = sld [smem:[#allocation6 + $0xa]]
        %v292 = vstv %s291
        %v294 = vsel %vm235, %v234, 0
        %v297 = vsel %vm183, %v290, 0
        %299 = vmatpush.msra.mxu0 0.0
        %300 = vmatpush.msra.mxu0 0.0
        %301 = vmatpush.msra.mxu0 0.0
        %302 = vmatpush.msra.mxu0 0.0
        %303 = vmatpush.msra.mxu0 0.0
        %304 = vmatpush.msra.mxu0 0.0
        %305 = vmatpush.msra.mxu0 0.0
        %306 = vmatpush.msra.mxu0 0.0
        %307 = vmatpush.msra.mxu0 0.0
        %308 = vmatpush.msra.mxu0 0.0
        %309 = vmatpush.msra.mxu0 0.0
        %310 = vmatpush.msra.mxu0 0.0
        %311 = vmatpush.msra.mxu0 0.0
        %312 = vmatpush.msra.mxu0 0.0
        %313 = vmatpush.msra.mxu0 0.0
        %314 = vmatpush.msra.mxu0 %v297
        %315 = vmatmul.f32.gmra.mxu0 %v294
        %v316 = vpop.f32.mrf.mxu0
        %v317 = vadd.f32 %v292, %v316
        %318 = vdwg.mxu0
        %v319 = vxor.u32 %v317, 2147483648
        %v320 = vmul.f32 %v319, 1.442695
        %v321 = vpow.pop %v320
        %v322 = vadd.f32 %v321, 1.0
        %v323 = vrcp.pop %v322
        %v324 = vmul.f32 %v322, %v323
        %v325 = vsub.f32 1.0, %v324
        %v326 = vmul.f32 %v323, %v325
        %v327 = vadd.f32 %v323, %v326
        %vm328 = vweird.f32 %v322
        %vm329 = vweird.f32 %v323
        %vm330 = vmor %vm328, %vm329
        %v331 = vsel %vm330, %v323, %v327
        %v332 = vand.u32 2147483647, %v322
        %vm333 = vcmp.eq.f32.partialorder %v332, 8.507059e+37
        %v334 = vand.u32 %v322, 2147483648
        %v335 = vor.u32 1.1754944e-38, %v334
        %v336 = vsel %vm333, %v335, %v331
        %v337 = vmul.f32 1.0, %v336
        %339 = vset.pattern.permute.xlu0 0
        %340 = vperm.xlu0 %339, %v337
        %v341 = vpop.permute.xlu0 %340
        %v343 = vunpack.c.l.s4 839922192
        %v344 = vunpack.c.0.s8 %v343
        %v345 = vperm.slane %v341, %v344
        %v347 = vmul.f32 %v176, %v345
        %348 = vst [vmem:[%s175] sm:$0xff] %v347
        %s349 = sand.u32 %s75, 1
        %s350 = scalar_lea.sflag [#allocation4], %s349
        %s351 = sand.u32 %s75, 1
        %s352 = smul.addr %s351, 8
        %s353 = scalar_lea.vmem [#allocation7], %s352
        // Predicated region
        $region37: #{tpu_custom_call.1} parent=27 // pred_check
          %p354 = pneg %p85
        $region38: #{tpu_custom_call.1} parent=27 // pred_check_branch
          %356 = sbr.rel (%p354) target = $region40
        $region39: #{tpu_custom_call.1} parent=27 // pred_region
          %358 = vsyncadd %s350, 0
          %s359 = smul.addr %s20, 2
          %s360 = smul.addr %s359, 4
          %s361 = scalar_lea.hbm %s2, %s360
          %s363 = sshll.u32 %s353, 4
          %s364 = int_to_ptr.vmem [resolvable:$true] %s363
          %s365 = sshll.u32 %s361, 4
          %s366 = int_to_ptr.hbm [resolvable:$true] %s365
          %368 = dma.vmem_to_hbm [thread:$0]  %s364, 128, %s366, %s350
        $region40: #{tpu_custom_call.1} parent=27 // pred_fallthru
          _
      $region28: #{tpu_custom_call.1} parent=5 // pred_fallthru
        _
      %p369 = scmp.le.s32.totalorder 2, %s15
      // Predicated region
      $region41: #{tpu_custom_call.1} parent=5 // pred_check
        %p370 = pneg %p369
      $region42: #{tpu_custom_call.1} parent=5 // pred_check_branch
        %372 = sbr.rel (%p370) target = $region44
      $region43: #{tpu_custom_call.1} parent=5 // pred_region
        %s373 = ssub.s32 %s15, 2
        // Predicated region
        $region45: #{tpu_custom_call.1} parent=43 // pred_check
          %p374 = pneg %p91
        $region46: #{tpu_custom_call.1} parent=43 // pred_check_branch
          %376 = sbr.rel (%p374) target = $region48
        $region47: #{tpu_custom_call.1} parent=43 // pred_region
          %s377 = sand.u32 %s76, 1
          %s378 = scalar_lea.sflag [#allocation4], %s377
          %s379 = sand.u32 %s76, 1
          %s380 = smul.addr %s379, 8
          %s381 = scalar_lea.vmem [#allocation7], %s380
          %383 = dma.done %s378, 128
        $region48: #{tpu_custom_call.1} parent=43 // pred_fallthru
          _
      $region44: #{tpu_custom_call.1} parent=5 // pred_fallthru
        _
    $region6: #{tpu_custom_call.1} parent=1 // loop_footer
      %s19 = sadd.s32 1, %s15
    $region7: #{tpu_custom_call.1} parent=1 // loop_footer_branch
      %14 = sbr.rel target = $region3
    $region8: #{tpu_custom_call.1} parent=1 // loop_exit
      _
    %384 = vsyncpa [#allocation3], 1
    %s385 = scalar_lea.sflag [#allocation3], 1
    %386 = vsyncpa %s385, 1
    %387 = vsyncpa [#allocation4], 1
    %s388 = scalar_lea.sflag [#allocation4], 1
    %389 = vsyncpa %s388, 1
    %390 = vsyncpa [#allocation5], 1
    %s391 = scalar_lea.sflag [#allocation5], 1
    %392 = vsyncpa %s391, 1

</llo_original>
